<compile_context>
chip_gen: v7x
topology: tpu7x:2x2x1
jax: 0.10.0
libtpu: 0.0.40
codegen_flags: <defaults>
</compile_context>

<pallas_src>
import functools
import math

import jax
import jax.numpy as jnp
import numpy as np
from jax.experimental import pallas as pl
from jax.experimental.pallas import tpu as pltpu


def _layer_heights(sentence_size):
    # conv1 (h=2), conv2 (h=2), conv3 (h=3), and conv4 (h=3) only when S == 7.
    return (2, 2, 3, 3) if sentence_size == 7 else (2, 2, 3)


def _make_csm_kernel(heights, lanes):
    def kernel(x_ref, w_ref, out_ref):
        # x_ref   : VMEM (1, S, lanes) f32 — embedded, lane-dense batch tile
        #           (lane index = b_local * E + e)
        # w_ref   : VMEM (sum_h, lanes) f32 — conv taps pre-tiled across lanes
        # out_ref : VMEM (1, 1, lanes) f32
        x = x_ref[0]                                   # (S, lanes) value
        off = 0
        for h in heights:
            # One contiguous (h, lanes) tap load per layer, then slice the
            # value per tap.  (Holding the whole (sum_h, lanes) tap matrix
            # live for the entire cascade would cost sum_h*lanes/128 vregs.)
            w = w_ref[off:off + h, :]
            L = x.shape[0] - h + 1
            acc = x[0:L, :] * w[0:1, :]                # tap 0 (sublane bcast)
            for t in range(1, h):
                acc = acc + x[t:t + L, :] * w[t:t + 1, :]
            x = jax.nn.sigmoid(acc)                    # VPU mul/add + EUP exp
            off += h
        # Both S=5 and S=7 cascades collapse the sequence axis to length 1.
        out_ref[...] = x.reshape(1, 1, lanes)

    return kernel


def csm_forward(token_ids, embedding, conv_params, sentence_size):
    """Pallas implementation of CSM.forward.

    token_ids: (B, S) int
    embedding: (vocab, E) float
    conv_params: (conv1, conv2, conv3, conv4) each (h, E) float
    """
    assert sentence_size in (5, 7)
    B, S = token_ids.shape
    assert S == sentence_size
    vocab, E = embedding.shape

    heights = _layer_heights(sentence_size)
    used = conv_params[:len(heights)]

    # ---- Batch-tile sizing -------------------------------------------------
    # lanes = tb*E must be a multiple of 128 (lane-dense vregs, unmasked
    # output stores).  Cap lanes at 512 so that two consecutive layer
    # activations (the cascade's live set) plus the taps stay well under the
    # 64-vreg register file (no spills on any TPU generation).
    tb_unit = 128 // math.gcd(E, 128)                # smallest lane-dense tb
    tb_cap = max(tb_unit, (512 // max(E, 1)) // tb_unit * tb_unit)
    half = -(-B // 2)                                # ceil(B / 2)
    tb = min(tb_cap, max(tb_unit, -(-half // tb_unit) * tb_unit))
    grid_b = -(-B // tb)
    if grid_b < 2:
        grid_b = 2       # >= 2 grid steps so both v7x TensorCores get work
    elif grid_b % 2:
        grid_b += 1      # even step count balances the two TCs
    b_pad = grid_b * tb
    lanes = tb * E

    # ---- Wrapper-side embedding gather into a lane-dense slab ---------------
    # XLA performs the (B, S) -> (B, S, E) gather; we permute it so each grid
    # step consumes one contiguous (S, tb*E) tile (lane = b_local*E + e),
    # streamed from HBM by BlockSpec double-buffering.  Padded batch rows are
    # zeros; they are computed and sliced off below.
    x = embedding[token_ids].astype(jnp.float32)            # (B, S, E)
    if b_pad != B:
        x = jnp.concatenate(
            [x, jnp.zeros((b_pad - B, S, E), jnp.float32)], axis=0)
    x = x.reshape(grid_b, tb, S, E).transpose(0, 2, 1, 3).reshape(
        grid_b, S, lanes)

    # ---- Conv taps: one small VMEM operand, pre-tiled across batch lanes ----
    taps = jnp.concatenate([c.astype(jnp.float32) for c in used], axis=0)
    w_tiled = jnp.tile(taps, (1, tb))                        # (sum_h, lanes)

    kernel = _make_csm_kernel(heights, lanes)
    out = pl.pallas_call(
        kernel,
        out_shape=jax.ShapeDtypeStruct((grid_b, 1, lanes), jnp.float32),
        grid_spec=pltpu.PrefetchScalarGridSpec(
            num_scalar_prefetch=0,
            grid=(grid_b,),
            in_specs=[
                pl.BlockSpec((1, S, lanes), lambda i: (i, 0, 0)),
                pl.BlockSpec(w_tiled.shape, lambda i: (0, 0)),
            ],
            out_specs=pl.BlockSpec((1, 1, lanes), lambda i: (i, 0, 0)),
        ),
        compiler_params=pltpu.CompilerParams(
            dimension_semantics=("parallel",)),
    )(x, w_tiled)

    # (grid_b, 1, tb*E) -> (b_pad, E) -> (B, E); lane index = b_local*E + e.
    return out.reshape(b_pad, E)[:B]


def csm_reference(token_ids, embedding, conv_params, sentence_size):
    """Pure-JAX reference mirroring the PyTorch module exactly."""

    def convolute(x, k):
        h = k.shape[0]
        L = x.shape[1] - h + 1
        acc = jnp.zeros((x.shape[0], L, x.shape[2]), jnp.float32)
        for t in range(h):
            acc = acc + x[:, t:t + L, :] * k[t][None, None, :]
        return acc

    x = embedding[token_ids].astype(jnp.float32)
    x = jax.nn.sigmoid(convolute(x, conv_params[0]))
    x = jax.nn.sigmoid(convolute(x, conv_params[1]))
    x = jax.nn.sigmoid(convolute(x, conv_params[2]))
    if sentence_size == 7:
        x = jax.nn.sigmoid(convolute(x, conv_params[3]))
    return x.reshape(x.shape[0], -1)


if __name__ == "__main__":
    vocab_size = 50
    embed_size = 32

    key = jax.random.PRNGKey(0)
    k_tok7, k_tok5, k_emb, k_c1, k_c2, k_c3, k_c4 = jax.random.split(key, 7)

    embedding = jax.random.normal(k_emb, (vocab_size, embed_size), jnp.float32)
    conv_params = (
        jax.random.normal(k_c1, (2, embed_size), jnp.float32),
        jax.random.normal(k_c2, (2, embed_size), jnp.float32),
        jax.random.normal(k_c3, (3, embed_size), jnp.float32),
        jax.random.normal(k_c4, (3, embed_size), jnp.float32),
    )

    # (S=7, B=50): multi-tile grid, non-multiple batch -> exercises padding.
    # (S=5, B=6) : tiny batch -> exercises the minimal-tile / grid>=2 path.
    cases = ((7, 50, k_tok7), (5, 6, k_tok5))
    for sentence_size, batch_size, k_tok in cases:
        token_ids = jax.random.randint(
            k_tok, (batch_size, sentence_size), 0, vocab_size, dtype=jnp.int32)

        fwd = jax.jit(functools.partial(csm_forward,
                                        sentence_size=sentence_size))
        out = jax.block_until_ready(fwd(token_ids, embedding, conv_params))

        ref = csm_reference(token_ids, embedding, conv_params, sentence_size)
        np.testing.assert_allclose(np.asarray(out), np.asarray(ref),
                                   rtol=1e-5, atol=1e-5)
        assert out.shape == (batch_size, embed_size)

    print("KERNEL_OK")
</pallas_src>

<mosaic_0001>
module attributes {stable_mosaic.version = 11 : i64} {
  func.func @kernel(%arg0: i32, %arg1: memref<1x7x512xf32, #tpu.memory_space<vmem>>, %arg2: memref<10x512xf32, #tpu.memory_space<vmem>>, %arg3: memref<1x1x512xf32, #tpu.memory_space<vmem>>) attributes {dimension_semantics = [#tpu.dimension_semantics<parallel>], iteration_bounds = array<i64: 4>, scalar_prefetch = 0 : i64, scratch_operands = 0 : i64, tpu.core_type = #tpu.core_type<tc>, window_params = [{transform_indices = @transform_0, window_bounds = array<i64: 1, 7, 512>}, {pipeline_mode = #tpu.pipeline_mode<synchronous>, transform_indices = @transform_1, window_bounds = array<i64: 10, 512>}, {transform_indices = @transform_2, window_bounds = array<i64: 1, 1, 512>}]} {
    %c0 = arith.constant 0 : index
    %c0_0 = arith.constant 0 : index
    %c0_1 = arith.constant 0 : index
    %0 = vector.load %arg1[%c0, %c0_0, %c0_1] : memref<1x7x512xf32, #tpu.memory_space<vmem>>, vector<1x7x512xf32>
    %1 = vector.shape_cast %0 : vector<1x7x512xf32> to vector<7x512xf32>
    %c0_2 = arith.constant 0 : index
    %c0_3 = arith.constant 0 : index
    %2 = vector.load %arg2[%c0_2, %c0_3] : memref<10x512xf32, #tpu.memory_space<vmem>>, vector<2x512xf32>
    %3 = vector.extract_strided_slice %1 {offsets = [0, 0], sizes = [6, 512], strides = [1, 1]} : vector<7x512xf32> to vector<6x512xf32>
    %4 = vector.extract_strided_slice %2 {offsets = [0, 0], sizes = [1, 512], strides = [1, 1]} : vector<2x512xf32> to vector<1x512xf32>
    %5 = vector.broadcast %4 : vector<1x512xf32> to vector<6x512xf32>
    %6 = arith.mulf %3, %5 : vector<6x512xf32>
    %7 = vector.extract_strided_slice %1 {offsets = [1, 0], sizes = [6, 512], strides = [1, 1]} : vector<7x512xf32> to vector<6x512xf32>
    %8 = vector.extract_strided_slice %2 {offsets = [1, 0], sizes = [1, 512], strides = [1, 1]} : vector<2x512xf32> to vector<1x512xf32>
    %9 = vector.broadcast %8 : vector<1x512xf32> to vector<6x512xf32>
    %10 = arith.mulf %7, %9 : vector<6x512xf32>
    %11 = arith.addf %6, %10 : vector<6x512xf32>
    %12 = arith.negf %11 : vector<6x512xf32>
    %13 = math.exp %12 : vector<6x512xf32>
    %cst = arith.constant 1.000000e+00 : f32
    %14 = vector.broadcast %cst : f32 to vector<6x512xf32>
    %15 = arith.addf %14, %13 : vector<6x512xf32>
    %16 = arith.divf %14, %15 : vector<6x512xf32>
    %c2 = arith.constant 2 : index
    %c0_4 = arith.constant 0 : index
    %17 = vector.load %arg2[%c2, %c0_4] : memref<10x512xf32, #tpu.memory_space<vmem>>, vector<2x512xf32>
    %18 = vector.extract_strided_slice %16 {offsets = [0, 0], sizes = [5, 512], strides = [1, 1]} : vector<6x512xf32> to vector<5x512xf32>
    %19 = vector.extract_strided_slice %17 {offsets = [0, 0], sizes = [1, 512], strides = [1, 1]} : vector<2x512xf32> to vector<1x512xf32>
    %20 = vector.broadcast %19 : vector<1x512xf32> to vector<5x512xf32>
    %21 = arith.mulf %18, %20 : vector<5x512xf32>
    %22 = vector.extract_strided_slice %16 {offsets = [1, 0], sizes = [5, 512], strides = [1, 1]} : vector<6x512xf32> to vector<5x512xf32>
    %23 = vector.extract_strided_slice %17 {offsets = [1, 0], sizes = [1, 512], strides = [1, 1]} : vector<2x512xf32> to vector<1x512xf32>
    %24 = vector.broadcast %23 : vector<1x512xf32> to vector<5x512xf32>
    %25 = arith.mulf %22, %24 : vector<5x512xf32>
    %26 = arith.addf %21, %25 : vector<5x512xf32>
    %27 = arith.negf %26 : vector<5x512xf32>
    %28 = math.exp %27 : vector<5x512xf32>
    %cst_5 = arith.constant 1.000000e+00 : f32
    %29 = vector.broadcast %cst_5 : f32 to vector<5x512xf32>
    %30 = arith.addf %29, %28 : vector<5x512xf32>
    %31 = arith.divf %29, %30 : vector<5x512xf32>
    %c4 = arith.constant 4 : index
    %c0_6 = arith.constant 0 : index
    %32 = vector.load %arg2[%c4, %c0_6] : memref<10x512xf32, #tpu.memory_space<vmem>>, vector<3x512xf32>
    %33 = vector.extract_strided_slice %31 {offsets = [0, 0], sizes = [3, 512], strides = [1, 1]} : vector<5x512xf32> to vector<3x512xf32>
    %34 = vector.extract_strided_slice %32 {offsets = [0, 0], sizes = [1, 512], strides = [1, 1]} : vector<3x512xf32> to vector<1x512xf32>
    %35 = vector.broadcast %34 : vector<1x512xf32> to vector<3x512xf32>
    %36 = arith.mulf %33, %35 : vector<3x512xf32>
    %37 = vector.extract_strided_slice %31 {offsets = [1, 0], sizes = [3, 512], strides = [1, 1]} : vector<5x512xf32> to vector<3x512xf32>
    %38 = vector.extract_strided_slice %32 {offsets = [1, 0], sizes = [1, 512], strides = [1, 1]} : vector<3x512xf32> to vector<1x512xf32>
    %39 = vector.broadcast %38 : vector<1x512xf32> to vector<3x512xf32>
    %40 = arith.mulf %37, %39 : vector<3x512xf32>
    %41 = arith.addf %36, %40 : vector<3x512xf32>
    %42 = vector.extract_strided_slice %31 {offsets = [2, 0], sizes = [3, 512], strides = [1, 1]} : vector<5x512xf32> to vector<3x512xf32>
    %43 = vector.extract_strided_slice %32 {offsets = [2, 0], sizes = [1, 512], strides = [1, 1]} : vector<3x512xf32> to vector<1x512xf32>
    %44 = vector.broadcast %43 : vector<1x512xf32> to vector<3x512xf32>
    %45 = arith.mulf %42, %44 : vector<3x512xf32>
    %46 = arith.addf %41, %45 : vector<3x512xf32>
    %47 = arith.negf %46 : vector<3x512xf32>
    %48 = math.exp %47 : vector<3x512xf32>
    %cst_7 = arith.constant 1.000000e+00 : f32
    %49 = vector.broadcast %cst_7 : f32 to vector<3x512xf32>
    %50 = arith.addf %49, %48 : vector<3x512xf32>
    %51 = arith.divf %49, %50 : vector<3x512xf32>
    %c7 = arith.constant 7 : index
    %c0_8 = arith.constant 0 : index
    %52 = vector.load %arg2[%c7, %c0_8] : memref<10x512xf32, #tpu.memory_space<vmem>>, vector<3x512xf32>
    %53 = vector.extract_strided_slice %51 {offsets = [0, 0], sizes = [1, 512], strides = [1, 1]} : vector<3x512xf32> to vector<1x512xf32>
    %54 = vector.extract_strided_slice %52 {offsets = [0, 0], sizes = [1, 512], strides = [1, 1]} : vector<3x512xf32> to vector<1x512xf32>
    %55 = arith.mulf %53, %54 : vector<1x512xf32>
    %56 = vector.extract_strided_slice %51 {offsets = [1, 0], sizes = [1, 512], strides = [1, 1]} : vector<3x512xf32> to vector<1x512xf32>
    %57 = vector.extract_strided_slice %52 {offsets = [1, 0], sizes = [1, 512], strides = [1, 1]} : vector<3x512xf32> to vector<1x512xf32>
    %58 = arith.mulf %56, %57 : vector<1x512xf32>
    %59 = arith.addf %55, %58 : vector<1x512xf32>
    %60 = vector.extract_strided_slice %51 {offsets = [2, 0], sizes = [1, 512], strides = [1, 1]} : vector<3x512xf32> to vector<1x512xf32>
    %61 = vector.extract_strided_slice %52 {offsets = [2, 0], sizes = [1, 512], strides = [1, 1]} : vector<3x512xf32> to vector<1x512xf32>
    %62 = arith.mulf %60, %61 : vector<1x512xf32>
    %63 = arith.addf %59, %62 : vector<1x512xf32>
    %64 = arith.negf %63 : vector<1x512xf32>
    %65 = math.exp %64 : vector<1x512xf32>
    %cst_9 = arith.constant 1.000000e+00 : f32
    %66 = vector.broadcast %cst_9 : f32 to vector<1x512xf32>
    %67 = arith.addf %66, %65 : vector<1x512xf32>
    %68 = arith.divf %66, %67 : vector<1x512xf32>
    %69 = vector.shape_cast %68 : vector<1x512xf32> to vector<1x1x512xf32>
    %c0_10 = arith.constant 0 : index
    %c0_11 = arith.constant 0 : index
    %c0_12 = arith.constant 0 : index
    %70 = vector.load %arg3[%c0_10, %c0_11, %c0_12] : memref<1x1x512xf32, #tpu.memory_space<vmem>>, vector<1x1x512xf32>
    tpu.vector_store %arg3[%c0_10, %c0_11, %c0_12], %69 {strides = array<i32>} : memref<1x1x512xf32, #tpu.memory_space<vmem>>, vector<1x1x512xf32>,
    return
  }
  func.func @transform_0(%arg0: i32) -> (i32, i32, i32) {
    %c0_i32 = arith.constant 0 : i32
    %c0_i32_0 = arith.constant 0 : i32
    %c0_i32_1 = arith.constant 0 : i32
    return %arg0, %c0_i32, %c0_i32_0 : i32, i32, i32
  }
  func.func @transform_1(%arg0: i32) -> (i32, i32) {
    %c0_i32 = arith.constant 0 : i32
    %c0_i32_0 = arith.constant 0 : i32
    %c0_i32_1 = arith.constant 0 : i32
    return %c0_i32, %c0_i32_0 : i32, i32
  }
  func.func @transform_2(%arg0: i32) -> (i32, i32, i32) {
    %c0_i32 = arith.constant 0 : i32
    %c0_i32_0 = arith.constant 0 : i32
    %c0_i32_1 = arith.constant 0 : i32
    return %arg0, %c0_i32, %c0_i32_0 : i32, i32, i32
  }
}

</mosaic_0001>

<llo_original>
// kernel: tile.9
$region0: #{tile.9}
  %s0 = inlined_call_operand.vmem [shape: f32[10,16,32], index: 0, kind: input, shape index: {}]
  %s1 = inlined_call_operand.vmem [shape: f32[10,512], index: 1, kind: output, shape index: {}]
  %v2 = vld [vmem:[%s0] ss:$4 sm:$0xff]
  %vm3 = vcmask 261120
  %4 = vst.msk [vmem:[%s1] ss:$8 sm:$0xf] %vm3, %v2
  %s5 = scalar_lea.vmem %s1, 4294967265
  %6 = vst.msk [vmem:[%s5] ss:$8 sm:$0xf0] %vm3, %v2
  %s7 = scalar_lea.vmem %s0, 32
  %v8 = vld [vmem:[%s7] ss:$4 sm:$0xff]
  %vm9 = vcmask 261120
  %s10 = scalar_lea.vmem %s1, 2
  %11 = vst.msk [vmem:[%s10] ss:$8 sm:$0xf] %vm9, %v8
  %s12 = scalar_lea.vmem %s1, 4294967267
  %13 = vst.msk [vmem:[%s12] ss:$8 sm:$0xf0] %vm9, %v8
  %s14 = scalar_lea.vmem %s0, 64
  %v15 = vld [vmem:[%s14] ss:$4 sm:$0xff]
  %vm16 = vcmask 261120
  %s17 = scalar_lea.vmem %s1, 4
  %18 = vst.msk [vmem:[%s17] ss:$8 sm:$0xf] %vm16, %v15
  %s19 = scalar_lea.vmem %s1, 4294967269
  %20 = vst.msk [vmem:[%s19] ss:$8 sm:$0xf0] %vm16, %v15
  %s21 = scalar_lea.vmem %s0, 96
  %v22 = vld [vmem:[%s21] ss:$4 sm:$0xff]
  %vm23 = vcmask 261120
  %s24 = scalar_lea.vmem %s1, 6
  %25 = vst.msk [vmem:[%s24] ss:$8 sm:$0xf] %vm23, %v22
  %s26 = scalar_lea.vmem %s1, 4294967271
  %27 = vst.msk [vmem:[%s26] ss:$8 sm:$0xf0] %vm23, %v22
  %s28 = scalar_lea.vmem %s0, 128
  %v29 = vld [vmem:[%s28] ss:$4 sm:$0xff]
  %vm30 = vcmask 261120
  %s31 = scalar_lea.vmem %s1, 32
  %32 = vst.msk [vmem:[%s31] ss:$8 sm:$0xf] %vm30, %v29
  %s33 = scalar_lea.vmem %s1, 1
  %34 = vst.msk [vmem:[%s33] ss:$8 sm:$0xf0] %vm30, %v29
  %s35 = scalar_lea.vmem %s0, 3
  %s36 = smov 3
  %v37 = vld [vmem:[%s35] ss:$16 sm:%s36]
  %s38 = scalar_lea.vmem %s0, 3
  %s39 = smov 12
  %v40 = vld [vmem:[%s38] ss:$16 sm:%s39]
  %vm41 = vcmask 1043458
  %v42 = vsel %vm41, %v40, %v37
  %s43 = scalar_lea.vmem %s0, 3
  %s44 = smov 48
  %v45 = vld [vmem:[%s43] ss:$16 sm:%s44]
  %vm46 = vcmask 1045508
  %v47 = vsel %vm46, %v45, %v42
  %s48 = scalar_lea.vmem %s0, 3
  %s49 = smov 192
  %v50 = vld [vmem:[%s48] ss:$16 sm:%s49]
  %vm51 = vcmask 1047558
  %v52 = vsel %vm51, %v50, %v47
  %53 = vrot.lane.b32.xlu0 %v52, 96
  %v54 = vpop.permute.xlu0 %53
  %vm55 = vcmask 1048320
  %56 = vst.msk [vmem:[%s1] sm:$0xff] %vm55, %v54
  %s57 = scalar_lea.vmem %s0, 131
  %s58 = smov 3
  %v59 = vld [vmem:[%s57] ss:$16 sm:%s58]
  %s60 = scalar_lea.vmem %s0, 4294967271
  %s61 = smov 12
  %v62 = vld [vmem:[%s60] ss:$16 sm:%s61]
  %vm63 = vcmask 1043458
  %v64 = vsel %vm63, %v62, %v59
  %s65 = scalar_lea.vmem %s0, 4294967271
  %s66 = smov 48
  %v67 = vld [vmem:[%s65] ss:$16 sm:%s66]
  %vm68 = vcmask 1045508
  %v69 = vsel %vm68, %v67, %v64
  %s70 = scalar_lea.vmem %s0, 4294967271
  %s71 = smov 192
  %v72 = vld [vmem:[%s70] ss:$16 sm:%s71]
  %vm73 = vcmask 1047558
  %v74 = vsel %vm73, %v72, %v69
  %75 = vrot.lane.b32.xlu0 %v74, 96
  %v76 = vpop.permute.xlu0 %75
  %vm77 = vcmask 1048320
  %s78 = scalar_lea.vmem %s1, 32
  %79 = vst.msk [vmem:[%s78] sm:$0x3] %vm77, %v76
  %s80 = scalar_lea.vmem %s1, 6
  %81 = vst.msk [vmem:[%s80] sm:$0xfc] %vm77, %v76
  %s82 = scalar_lea.vmem %s0, 135
  %s83 = smov 3
  %v84 = vld [vmem:[%s82] ss:$16 sm:%s83]
  %s85 = scalar_lea.vmem %s0, 71
  %s86 = smov 12
  %v87 = vld [vmem:[%s85] ss:$16 sm:%s86]
  %vm88 = vcmask 1043458
  %v89 = vsel %vm88, %v87, %v84
  %s90 = scalar_lea.vmem %s0, 4294967243
  %s91 = smov 48
  %v92 = vld [vmem:[%s90] ss:$16 sm:%s91]
  %vm93 = vcmask 1045508
  %v94 = vsel %vm93, %v92, %v89
  %s95 = scalar_lea.vmem %s0, 4294967243
  %s96 = smov 192
  %v97 = vld [vmem:[%s95] ss:$16 sm:%s96]
  %vm98 = vcmask 1047558
  %v99 = vsel %vm98, %v97, %v94
  %100 = vrot.lane.b32.xlu0 %v99, 96
  %v101 = vpop.permute.xlu0 %100
  %vm102 = vcmask 1048320
  %s103 = scalar_lea.vmem %s1, 40
  %104 = vst.msk [vmem:[%s103] sm:$0x3] %vm102, %v101
  %s105 = scalar_lea.vmem %s1, 12
  %106 = vst.msk [vmem:[%s105] sm:$0xfc] %vm102, %v101
  %s107 = scalar_lea.vmem %s0, 139
  %s108 = smov 3
  %v109 = vld [vmem:[%s107] ss:$16 sm:%s108]
  %s110 = scalar_lea.vmem %s0, 43
  %s111 = smov 12
  %v112 = vld [vmem:[%s110] ss:$16 sm:%s111]
  %vm113 = vcmask 1043458
  %v114 = vsel %vm113, %v112, %v109
  %s115 = scalar_lea.vmem %s0, 43
  %s116 = smov 48
  %v117 = vld [vmem:[%s115] ss:$16 sm:%s116]
  %vm118 = vcmask 1045508
  %v119 = vsel %vm118, %v117, %v114
  %s120 = scalar_lea.vmem %s0, 4294967215
  %s121 = smov 192
  %v122 = vld [vmem:[%s120] ss:$16 sm:%s121]
  %vm123 = vcmask 1047558
  %v124 = vsel %vm123, %v122, %v119
  %125 = vrot.lane.b32.xlu0 %v124, 96
  %v126 = vpop.permute.xlu0 %125
  %vm127 = vcmask 1048320
  %s128 = scalar_lea.vmem %s1, 48
  %129 = vst.msk [vmem:[%s128] sm:$0x3] %vm127, %v126
  %s130 = scalar_lea.vmem %s1, 18
  %131 = vst.msk [vmem:[%s130] sm:$0xfc] %vm127, %v126
  %s132 = scalar_lea.vmem %s0, 143
  %s133 = smov 3
  %v134 = vld [vmem:[%s132] ss:$16 sm:%s133]
  %s135 = scalar_lea.vmem %s0, 15
  %s136 = smov 12
  %v137 = vld [vmem:[%s135] ss:$16 sm:%s136]
  %vm138 = vcmask 1043458
  %v139 = vsel %vm138, %v137, %v134
  %s140 = scalar_lea.vmem %s0, 15
  %s141 = smov 48
  %v142 = vld [vmem:[%s140] ss:$16 sm:%s141]
  %vm143 = vcmask 1045508
  %v144 = vsel %vm143, %v142, %v139
  %s145 = scalar_lea.vmem %s0, 15
  %s146 = smov 192
  %v147 = vld [vmem:[%s145] ss:$16 sm:%s146]
  %vm148 = vcmask 1047558
  %v149 = vsel %vm148, %v147, %v144
  %150 = vrot.lane.b32.xlu0 %v149, 96
  %v151 = vpop.permute.xlu0 %150
  %vm152 = vcmask 1048320
  %s153 = scalar_lea.vmem %s1, 56
  %154 = vst.msk [vmem:[%s153] sm:$0x3] %vm152, %v151
  %s155 = scalar_lea.vmem %s1, 24
  %156 = vst.msk [vmem:[%s155] sm:$0xfc] %vm152, %v151
  %s157 = scalar_lea.vmem %s0, 2
  %s158 = smov 3
  %v159 = vld [vmem:[%s157] ss:$16 sm:%s158]
  %s160 = scalar_lea.vmem %s0, 2
  %s161 = smov 12
  %v162 = vld [vmem:[%s160] ss:$16 sm:%s161]
  %vm163 = vcmask 1043458
  %v164 = vsel %vm163, %v162, %v159
  %s165 = scalar_lea.vmem %s0, 2
  %s166 = smov 48
  %v167 = vld [vmem:[%s165] ss:$16 sm:%s166]
  %vm168 = vcmask 1045508
  %v169 = vsel %vm168, %v167, %v164
  %s170 = scalar_lea.vmem %s0, 2
  %s171 = smov 192
  %v172 = vld [vmem:[%s170] ss:$16 sm:%s171]
  %vm173 = vcmask 1047558
  %v174 = vsel %vm173, %v172, %v169
  %175 = vrot.lane.b32.xlu0 %v174, 64
  %v176 = vpop.permute.xlu0 %175
  %vm177 = vcmask 785920
  %178 = vst.msk [vmem:[%s1] sm:$0xff] %vm177, %v176
  %s179 = scalar_lea.vmem %s0, 130
  %s180 = smov 3
  %v181 = vld [vmem:[%s179] ss:$16 sm:%s180]
  %s182 = scalar_lea.vmem %s0, 4294967270
  %s183 = smov 12
  %v184 = vld [vmem:[%s182] ss:$16 sm:%s183]
  %vm185 = vcmask 1043458
  %v186 = vsel %vm185, %v184, %v181
  %s187 = scalar_lea.vmem %s0, 4294967270
  %s188 = smov 48
  %v189 = vld [vmem:[%s187] ss:$16 sm:%s188]
  %vm190 = vcmask 1045508
  %v191 = vsel %vm190, %v189, %v186
  %s192 = scalar_lea.vmem %s0, 4294967270
  %s193 = smov 192
  %v194 = vld [vmem:[%s192] ss:$16 sm:%s193]
  %vm195 = vcmask 1047558
  %v196 = vsel %vm195, %v194, %v191
  %197 = vrot.lane.b32.xlu0 %v196, 64
  %v198 = vpop.permute.xlu0 %197
  %vm199 = vcmask 785920
  %s200 = scalar_lea.vmem %s1, 32
  %201 = vst.msk [vmem:[%s200] sm:$0x3] %vm199, %v198
  %s202 = scalar_lea.vmem %s1, 6
  %203 = vst.msk [vmem:[%s202] sm:$0xfc] %vm199, %v198
  %s204 = scalar_lea.vmem %s0, 134
  %s205 = smov 3
  %v206 = vld [vmem:[%s204] ss:$16 sm:%s205]
  %s207 = scalar_lea.vmem %s0, 70
  %s208 = smov 12
  %v209 = vld [vmem:[%s207] ss:$16 sm:%s208]
  %vm210 = vcmask 1043458
  %v211 = vsel %vm210, %v209, %v206
  %s212 = scalar_lea.vmem %s0, 4294967242
  %s213 = smov 48
  %v214 = vld [vmem:[%s212] ss:$16 sm:%s213]
  %vm215 = vcmask 1045508
  %v216 = vsel %vm215, %v214, %v211
  %s217 = scalar_lea.vmem %s0, 4294967242
  %s218 = smov 192
  %v219 = vld [vmem:[%s217] ss:$16 sm:%s218]
  %vm220 = vcmask 1047558
  %v221 = vsel %vm220, %v219, %v216
  %222 = vrot.lane.b32.xlu0 %v221, 64
  %v223 = vpop.permute.xlu0 %222
  %vm224 = vcmask 785920
  %s225 = scalar_lea.vmem %s1, 40
  %226 = vst.msk [vmem:[%s225] sm:$0x3] %vm224, %v223
  %s227 = scalar_lea.vmem %s1, 12
  %228 = vst.msk [vmem:[%s227] sm:$0xfc] %vm224, %v223
  %s229 = scalar_lea.vmem %s0, 138
  %s230 = smov 3
  %v231 = vld [vmem:[%s229] ss:$16 sm:%s230]
  %s232 = scalar_lea.vmem %s0, 42
  %s233 = smov 12
  %v234 = vld [vmem:[%s232] ss:$16 sm:%s233]
  %vm235 = vcmask 1043458
  %v236 = vsel %vm235, %v234, %v231
  %s237 = scalar_lea.vmem %s0, 42
  %s238 = smov 48
  %v239 = vld [vmem:[%s237] ss:$16 sm:%s238]
  %vm240 = vcmask 1045508
  %v241 = vsel %vm240, %v239, %v236
  %s242 = scalar_lea.vmem %s0, 4294967214
  %s243 = smov 192
  %v244 = vld [vmem:[%s242] ss:$16 sm:%s243]
  %vm245 = vcmask 1047558
  %v246 = vsel %vm245, %v244, %v241
  %247 = vrot.lane.b32.xlu0 %v246, 64
  %v248 = vpop.permute.xlu0 %247
  %vm249 = vcmask 785920
  %s250 = scalar_lea.vmem %s1, 48
  %251 = vst.msk [vmem:[%s250] sm:$0x3] %vm249, %v248
  %s252 = scalar_lea.vmem %s1, 18
  %253 = vst.msk [vmem:[%s252] sm:$0xfc] %vm249, %v248
  %s254 = scalar_lea.vmem %s0, 142
  %s255 = smov 3
  %v256 = vld [vmem:[%s254] ss:$16 sm:%s255]
  %s257 = scalar_lea.vmem %s0, 14
  %s258 = smov 12
  %v259 = vld [vmem:[%s257] ss:$16 sm:%s258]
  %vm260 = vcmask 1043458
  %v261 = vsel %vm260, %v259, %v256
  %s262 = scalar_lea.vmem %s0, 14
  %s263 = smov 48
  %v264 = vld [vmem:[%s262] ss:$16 sm:%s263]
  %vm265 = vcmask 1045508
  %v266 = vsel %vm265, %v264, %v261
  %s267 = scalar_lea.vmem %s0, 14
  %s268 = smov 192
  %v269 = vld [vmem:[%s267] ss:$16 sm:%s268]
  %vm270 = vcmask 1047558
  %v271 = vsel %vm270, %v269, %v266
  %272 = vrot.lane.b32.xlu0 %v271, 64
  %v273 = vpop.permute.xlu0 %272
  %vm274 = vcmask 785920
  %s275 = scalar_lea.vmem %s1, 56
  %276 = vst.msk [vmem:[%s275] sm:$0x3] %vm274, %v273
  %s277 = scalar_lea.vmem %s1, 24
  %278 = vst.msk [vmem:[%s277] sm:$0xfc] %vm274, %v273
  %s279 = scalar_lea.vmem %s0, 1
  %s280 = smov 3
  %v281 = vld [vmem:[%s279] ss:$16 sm:%s280]
  %s282 = scalar_lea.vmem %s0, 1
  %s283 = smov 12
  %v284 = vld [vmem:[%s282] ss:$16 sm:%s283]
  %vm285 = vcmask 1043458
  %v286 = vsel %vm285, %v284, %v281
  %s287 = scalar_lea.vmem %s0, 1
  %s288 = smov 48
  %v289 = vld [vmem:[%s287] ss:$16 sm:%s288]
  %vm290 = vcmask 1045508
  %v291 = vsel %vm290, %v289, %v286
  %s292 = scalar_lea.vmem %s0, 1
  %s293 = smov 192
  %v294 = vld [vmem:[%s292] ss:$16 sm:%s293]
  %vm295 = vcmask 1047558
  %v296 = vsel %vm295, %v294, %v291
  %297 = vrot.lane.b32.xlu0 %v296, 32
  %v298 = vpop.permute.xlu0 %297
  %vm299 = vcmask 523520
  %300 = vst.msk [vmem:[%s1] sm:$0xff] %vm299, %v298
  %s301 = scalar_lea.vmem %s0, 129
  %s302 = smov 3
  %v303 = vld [vmem:[%s301] ss:$16 sm:%s302]
  %s304 = scalar_lea.vmem %s0, 4294967269
  %s305 = smov 12
  %v306 = vld [vmem:[%s304] ss:$16 sm:%s305]
  %vm307 = vcmask 1043458
  %v308 = vsel %vm307, %v306, %v303
  %s309 = scalar_lea.vmem %s0, 4294967269
  %s310 = smov 48
  %v311 = vld [vmem:[%s309] ss:$16 sm:%s310]
  %vm312 = vcmask 1045508
  %v313 = vsel %vm312, %v311, %v308
  %s314 = scalar_lea.vmem %s0, 4294967269
  %s315 = smov 192
  %v316 = vld [vmem:[%s314] ss:$16 sm:%s315]
  %vm317 = vcmask 1047558
  %v318 = vsel %vm317, %v316, %v313
  %319 = vrot.lane.b32.xlu0 %v318, 32
  %v320 = vpop.permute.xlu0 %319
  %vm321 = vcmask 523520
  %s322 = scalar_lea.vmem %s1, 32
  %323 = vst.msk [vmem:[%s322] sm:$0x3] %vm321, %v320
  %s324 = scalar_lea.vmem %s1, 6
  %325 = vst.msk [vmem:[%s324] sm:$0xfc] %vm321, %v320
  %s326 = scalar_lea.vmem %s0, 133
  %s327 = smov 3
  %v328 = vld [vmem:[%s326] ss:$16 sm:%s327]
  %s329 = scalar_lea.vmem %s0, 69
  %s330 = smov 12
  %v331 = vld [vmem:[%s329] ss:$16 sm:%s330]
  %vm332 = vcmask 1043458
  %v333 = vsel %vm332, %v331, %v328
  %s334 = scalar_lea.vmem %s0, 4294967241
  %s335 = smov 48
  %v336 = vld [vmem:[%s334] ss:$16 sm:%s335]
  %vm337 = vcmask 1045508
  %v338 = vsel %vm337, %v336, %v333
  %s339 = scalar_lea.vmem %s0, 4294967241
  %s340 = smov 192
  %v341 = vld [vmem:[%s339] ss:$16 sm:%s340]
  %vm342 = vcmask 1047558
  %v343 = vsel %vm342, %v341, %v338
  %344 = vrot.lane.b32.xlu0 %v343, 32
  %v345 = vpop.permute.xlu0 %344
  %vm346 = vcmask 523520
  %s347 = scalar_lea.vmem %s1, 40
  %348 = vst.msk [vmem:[%s347] sm:$0x3] %vm346, %v345
  %s349 = scalar_lea.vmem %s1, 12
  %350 = vst.msk [vmem:[%s349] sm:$0xfc] %vm346, %v345
  %s351 = scalar_lea.vmem %s0, 137
  %s352 = smov 3
  %v353 = vld [vmem:[%s351] ss:$16 sm:%s352]
  %s354 = scalar_lea.vmem %s0, 41
  %s355 = smov 12
  %v356 = vld [vmem:[%s354] ss:$16 sm:%s355]
  %vm357 = vcmask 1043458
  %v358 = vsel %vm357, %v356, %v353
  %s359 = scalar_lea.vmem %s0, 41
  %s360 = smov 48
  %v361 = vld [vmem:[%s359] ss:$16 sm:%s360]
  %vm362 = vcmask 1045508
  %v363 = vsel %vm362, %v361, %v358
  %s364 = scalar_lea.vmem %s0, 4294967213
  %s365 = smov 192
  %v366 = vld [vmem:[%s364] ss:$16 sm:%s365]
  %vm367 = vcmask 1047558
  %v368 = vsel %vm367, %v366, %v363
  %369 = vrot.lane.b32.xlu0 %v368, 32
  %v370 = vpop.permute.xlu0 %369
  %vm371 = vcmask 523520
  %s372 = scalar_lea.vmem %s1, 48
  %373 = vst.msk [vmem:[%s372] sm:$0x3] %vm371, %v370
  %s374 = scalar_lea.vmem %s1, 18
  %375 = vst.msk [vmem:[%s374] sm:$0xfc] %vm371, %v370
  %s376 = scalar_lea.vmem %s0, 141
  %s377 = smov 3
  %v378 = vld [vmem:[%s376] ss:$16 sm:%s377]
  %s379 = scalar_lea.vmem %s0, 13
  %s380 = smov 12
  %v381 = vld [vmem:[%s379] ss:$16 sm:%s380]
  %vm382 = vcmask 1043458
  %v383 = vsel %vm382, %v381, %v378
  %s384 = scalar_lea.vmem %s0, 13
  %s385 = smov 48
  %v386 = vld [vmem:[%s384] ss:$16 sm:%s385]
  %vm387 = vcmask 1045508
  %v388 = vsel %vm387, %v386, %v383
  %s389 = scalar_lea.vmem %s0, 13
  %s390 = smov 192
  %v391 = vld [vmem:[%s389] ss:$16 sm:%s390]
  %vm392 = vcmask 1047558
  %v393 = vsel %vm392, %v391, %v388
  %394 = vrot.lane.b32.xlu0 %v393, 32
  %v395 = vpop.permute.xlu0 %394
  %vm396 = vcmask 523520
  %s397 = scalar_lea.vmem %s1, 56
  %398 = vst.msk [vmem:[%s397] sm:$0x3] %vm396, %v395
  %s399 = scalar_lea.vmem %s1, 24
  %400 = vst.msk [vmem:[%s399] sm:$0xfc] %vm396, %v395

// kernel: csm_forward.1
$region0: #{csm_forward.1}
  #allocation0 [shape = 'u32[]', space=smem, size = 0x4, offset = 0x4, fixed_abs, tag = 'smem constant byte address 0x4 - core index']
  #allocation1 [shape = 'u32[144,128]{1,0:T(1,128)}', space=vmem, size = 0x12000, scoped, tag = 'internal scratch']
  %s0 = inlined_call_operand.vmem [shape: f32[4,7,512], index: 0, kind: input, shape index: {}]
  %s1 = inlined_call_operand.vmem [shape: f32[10,512], index: 1, kind: input, shape index: {}]
  %s2 = inlined_call_operand.vmem [shape: f32[4,1,512], index: 2, kind: output, shape index: {}]
  %s3 = sld [smem:[#allocation0]]
  $region41: #{csm_forward.1} parent=0
    _
  %s5 = ssub.s32 1, %s3
  %s6 = scalar_select 0, %s5, %s3
  loop: start=0, step=1, limit=6
  $region2: #{csm_forward.1} parent=0 // loop_pre_header
    _
  $region3: #{csm_forward.1} parent=0 // loop_header
    %s8 = sphi 0, %s12
    %p9 = scmp.ge.s32.totalorder %s8, 6
    %s18 = sphi 0, %s20
    %s21 = sphi 0, %s18
    %s22 = sphi 0, %s21
    %s38 = sphi 0, %s22
    %s42 = sphi 0, %s42
    %s44 = sphi 0, %s42
    %s45 = sphi 0, %s44
    %s59 = sphi 0, %s45
    %s65 = sphi 0, %s67
    %s68 = sphi 0, %s65
    %s69 = sphi 0, %s68
    %s85 = sphi 0, %s69
  $region4: #{csm_forward.1} parent=0 // loop_header_branch
    %11 = sbr.rel (%p9) target = $region8
  $region5: #{csm_forward.1} parent=0 // loop_body
    %s13 = ssub.s32 %s8, 1
    %s14 = ssub.s32 %s8, 2
    %s15 = sadd.s32 %s8, 1
    %s16 = ssub.s32 %s8, %s15
    %p17 = scmp.eq.s32.totalorder %s16, 0
    %s19 = sadd.s32 %s18, 1
    %s20 = scalar_select %p17, %s18, %s19
    %p23 = pneg %p17
    %p24 = scmp.eq.s32.totalorder %s8, 3
    %p25 = por %p23, %p24
    %p26 = scmp.ne.s32.totalorder %s18, %s21
    %p27 = scmp.eq.s32.totalorder %s8, 0
    %p28 = por %p26, %p27
    %p29 = scmp.ne.s32.totalorder %s18, %s21
    %p30 = scmp.eq.s32.totalorder %s13, 3
    %p31 = por %p29, %p30
    %p32 = scmp.ne.s32.totalorder %s21, %s22
    %p33 = scmp.eq.s32.totalorder %s13, 0
    %p34 = por %p32, %p33
    %p35 = scmp.ne.s32.totalorder %s21, %s22
    %p36 = scmp.eq.s32.totalorder %s14, 3
    %p37 = por %p35, %p36
    %p39 = scmp.ne.s32.totalorder %s22, %s38
    %p40 = scmp.eq.s32.totalorder %s14, 0
    %p41 = por %p39, %p40
    %s43 = sadd.s32 %s42, 1
    %p46 = scmp.eq.s32.totalorder %s8, 3
    %p47 = scmp.ne.s32.totalorder %s42, %s44
    %p48 = scmp.eq.s32.totalorder %s8, 0
    %p49 = por %p47, %p48
    %p50 = scmp.ne.s32.totalorder %s42, %s44
    %p51 = scmp.eq.s32.totalorder %s13, 3
    %p52 = por %p50, %p51
    %p53 = scmp.ne.s32.totalorder %s44, %s45
    %p54 = scmp.eq.s32.totalorder %s13, 0
    %p55 = por %p53, %p54
    %p56 = scmp.ne.s32.totalorder %s44, %s45
    %p57 = scmp.eq.s32.totalorder %s14, 3
    %p58 = por %p56, %p57
    %p60 = scmp.ne.s32.totalorder %s45, %s59
    %p61 = scmp.eq.s32.totalorder %s14, 0
    %p62 = por %p60, %p61
    %s63 = ssub.s32 %s8, %s15
    %p64 = scmp.eq.s32.totalorder %s63, 0
    %s66 = sadd.s32 %s65, 1
    %s67 = scalar_select %p64, %s65, %s66
    %p70 = pneg %p64
    %p71 = scmp.eq.s32.totalorder %s8, 3
    %p72 = por %p70, %p71
    %p73 = scmp.ne.s32.totalorder %s65, %s68
    %p74 = scmp.eq.s32.totalorder %s8, 0
    %p75 = por %p73, %p74
    %p76 = scmp.ne.s32.totalorder %s65, %s68
    %p77 = scmp.eq.s32.totalorder %s13, 3
    %p78 = por %p76, %p77
    %p79 = scmp.ne.s32.totalorder %s68, %s69
    %p80 = scmp.eq.s32.totalorder %s13, 0
    %p81 = por %p79, %p80
    %p82 = scmp.ne.s32.totalorder %s68, %s69
    %p83 = scmp.eq.s32.totalorder %s14, 3
    %p84 = por %p82, %p83
    %p86 = scmp.ne.s32.totalorder %s69, %s85
    %p87 = scmp.eq.s32.totalorder %s14, 0
    %p88 = por %p86, %p87
    %p89 = scmp.le.s32.totalorder 1, %s8
    %p90 = scmp.lt.s32.totalorder %s8, 5
    %p91 = pnand %p89, %p90
    %p92 = pneg %p91
    // Predicated region
    $region9: #{csm_forward.1} parent=5 // pred_check
      _
    $region10: #{csm_forward.1} parent=5 // pred_check_branch
      %94 = sbr.rel (%p91) target = $region12
    $region11: #{csm_forward.1} parent=5 // pred_region
      %s95 = ssub.s32 %s8, 1
      // Predicated region
      $region13: #{csm_forward.1} parent=11 // pred_check
        %p96 = pneg %p55
      $region14: #{csm_forward.1} parent=11 // pred_check_branch
        %98 = sbr.rel (%p96) target = $region16
      $region15: #{csm_forward.1} parent=11 // pred_region
        _
      $region16: #{csm_forward.1} parent=11 // pred_fallthru
        _
    $region12: #{csm_forward.1} parent=5 // pred_fallthru
      _
    %p99 = scmp.lt.s32.totalorder %s8, 4
    // Predicated region
    $region17: #{csm_forward.1} parent=5 // pred_check
      %p100 = pneg %p99
    $region18: #{csm_forward.1} parent=5 // pred_check_branch
      %102 = sbr.rel (%p100) target = $region20
    $region19: #{csm_forward.1} parent=5 // pred_region
      // Predicated region
      $region21: #{csm_forward.1} parent=19 // pred_check
        %p103 = pneg %p28
      $region22: #{csm_forward.1} parent=19 // pred_check_branch
        %105 = sbr.rel (%p103) target = $region24
      $region23: #{csm_forward.1} parent=19 // pred_region
        %p106 = scmp.lt.s32.totalorder %s8, 3
        %s107 = scalar_select %p106, %s8, 3
        %s108 = smul.addr %s107, 4
        %s109 = smul.addr %s108, 8
        %s110 = scalar_lea.vmem %s0, %s109
      $region24: #{csm_forward.1} parent=19 // pred_fallthru
        _
    $region20: #{csm_forward.1} parent=5 // pred_fallthru
      _
    %p111 = scmp.le.s32.totalorder 1, %s8
    %p112 = scmp.lt.s32.totalorder %s8, 5
    %p113 = pnand %p111, %p112
    %p114 = pneg %p113
    // Predicated region
    $region25: #{csm_forward.1} parent=5 // pred_check
      _
    $region26: #{csm_forward.1} parent=5 // pred_check_branch
      %116 = sbr.rel (%p113) target = $region28
    $region27: #{csm_forward.1} parent=5 // pred_region
      %s117 = ssub.s32 %s8, 1
      %p118 = scmp.lt.s32.totalorder %s13, 3
      %s119 = scalar_select %p118, %s13, 3
      %s120 = smul.addr %s119, 4
      %s121 = smul.addr %s120, 8
      %s122 = scalar_lea.vmem %s0, %s121
      %p123 = pneg %p34
      %p124 = pneg %p31
      %p125 = pneg %p55
      %p126 = pneg %p52
      %p127 = pneg %p81
      %p128 = pneg %p78
      %p129 = scmp.lt.s32.totalorder %s13, 3
      %s130 = scalar_select %p129, %s13, 3
      %s131 = smul.addr %s130, 4
      %s132 = scalar_lea.vmem %s2, %s131
      %p133 = scmp.lt.s32.totalorder %s13, 3
      %s134 = scalar_select %p133, %s13, 3
      %s135 = smul.addr %s134, 4
      %s136 = smul.addr %s135, 8
      %s137 = scalar_lea.vmem %s0, %s136
      %p138 = scmp.lt.s32.totalorder %s13, 3
      %s139 = scalar_select %p138, %s13, 3
      %s140 = smul.addr %s139, 4
      %s141 = scalar_lea.vmem %s2, %s140
      %v142 = vld [vmem:[%s137] sm:$0x7f]
      %v143 = vld [vmem:[%s137 + $0x8] sm:$0x7f]
      %v144 = vld [vmem:[%s137 + $0x10] sm:$0x7f]
      %v145 = vld [vmem:[%s137 + $0x18] sm:$0x7f]
      %v146 = vld [vmem:[%s1] sm:$0x3]
      %v147 = vld [vmem:[%s1 + $0x8] sm:$0x3]
      %v148 = vld [vmem:[%s1 + $0x10] sm:$0x3]
      %v149 = vld [vmem:[%s1 + $0x18] sm:$0x3]
      %v150 = vlaneseq
      %v151 = vshrl.u32 %v150, 7
      %v152 = vsub.s32 0, %v151
      %v153 = vrot.slane %v146, %v152
      %v154 = vlaneseq
      %v155 = vshrl.u32 %v154, 7
      %v156 = vsub.s32 0, %v155
      %v157 = vrot.slane %v147, %v156
      %v158 = vlaneseq
      %v159 = vshrl.u32 %v158, 7
      %v160 = vsub.s32 0, %v159
      %v161 = vrot.slane %v148, %v160
      %v162 = vlaneseq
      %v163 = vshrl.u32 %v162, 7
      %v164 = vsub.s32 0, %v163
      %v165 = vrot.slane %v149, %v164
      %v166 = vmul.f32 %v142, %v153
      %v167 = vmul.f32 %v143, %v157
      %v168 = vmul.f32 %v144, %v161
      %v169 = vmul.f32 %v145, %v165
      %v170 = vlaneseq
      %v171 = vshrl.u32 %v170, 7
      %v172 = vsub.s32 1, %v171
      %v173 = vrot.slane %v146, %v172
      %v174 = vlaneseq
      %v175 = vshrl.u32 %v174, 7
      %v176 = vsub.s32 1, %v175
      %v177 = vrot.slane %v147, %v176
      %v178 = vlaneseq
      %v179 = vshrl.u32 %v178, 7
      %v180 = vsub.s32 1, %v179
      %v181 = vrot.slane %v148, %v180
      %v182 = vlaneseq
      %v183 = vshrl.u32 %v182, 7
      %v184 = vsub.s32 1, %v183
      %v185 = vrot.slane %v149, %v184
      %v186 = vmul.f32 %v142, %v173
      %v187 = vmul.f32 %v143, %v177
      %v188 = vmul.f32 %v144, %v181
      %v189 = vmul.f32 %v145, %v185
      %v194 = vrot.slane %v186, 1
      %v195 = vrot.slane %v187, 1
      %v196 = vrot.slane %v188, 1
      %v197 = vrot.slane %v189, 1
      %v202 = vadd.f32 %v166, %v194
      %v203 = vadd.f32 %v167, %v195
      %v204 = vadd.f32 %v168, %v196
      %v205 = vadd.f32 %v169, %v197
      %v206 = vxor.u32 %v202, 2147483648
      %v207 = vxor.u32 %v203, 2147483648
      %v208 = vxor.u32 %v204, 2147483648
      %v209 = vxor.u32 %v205, 2147483648
      %v210 = vmul.f32 %v206, 1.442695
      %v211 = vpow.pop %v210
      %v212 = vmul.f32 %v207, 1.442695
      %v213 = vpow.pop %v212
      %v214 = vmul.f32 %v208, 1.442695
      %v215 = vpow.pop %v214
      %v216 = vmul.f32 %v209, 1.442695
      %v217 = vpow.pop %v216
      %v218 = vadd.f32 %v211, 1.0
      %v219 = vadd.f32 %v213, 1.0
      %v220 = vadd.f32 %v215, 1.0
      %v221 = vadd.f32 %v217, 1.0
      %v222 = vrcp.pop %v218
      %v223 = vmul.f32 1.0, %v222
      %v224 = vrcp.pop %v219
      %v225 = vmul.f32 1.0, %v224
      %v226 = vrcp.pop %v220
      %v227 = vmul.f32 1.0, %v226
      %v228 = vrcp.pop %v221
      %v229 = vmul.f32 1.0, %v228
      %v230 = vld [vmem:[%s1] sm:$0xc]
      %v231 = vld [vmem:[%s1 + $0x8] sm:$0xc]
      %v232 = vld [vmem:[%s1 + $0x10] sm:$0xc]
      %v233 = vld [vmem:[%s1 + $0x18] sm:$0xc]
      %v234 = vlaneseq
      %v235 = vshrl.u32 %v234, 7
      %v236 = vsub.s32 2, %v235
      %v237 = vrot.slane %v230, %v236
      %v238 = vlaneseq
      %v239 = vshrl.u32 %v238, 7
      %v240 = vsub.s32 2, %v239
      %v241 = vrot.slane %v231, %v240
      %v242 = vlaneseq
      %v243 = vshrl.u32 %v242, 7
      %v244 = vsub.s32 2, %v243
      %v245 = vrot.slane %v232, %v244
      %v246 = vlaneseq
      %v247 = vshrl.u32 %v246, 7
      %v248 = vsub.s32 2, %v247
      %v249 = vrot.slane %v233, %v248
      %v250 = vmul.f32 %v223, %v237
      %v251 = vmul.f32 %v225, %v241
      %v252 = vmul.f32 %v227, %v245
      %v253 = vmul.f32 %v229, %v249
      %v254 = vlaneseq
      %v255 = vshrl.u32 %v254, 7
      %v256 = vsub.s32 3, %v255
      %v257 = vrot.slane %v230, %v256
      %v258 = vlaneseq
      %v259 = vshrl.u32 %v258, 7
      %v260 = vsub.s32 3, %v259
      %v261 = vrot.slane %v231, %v260
      %v262 = vlaneseq
      %v263 = vshrl.u32 %v262, 7
      %v264 = vsub.s32 3, %v263
      %v265 = vrot.slane %v232, %v264
      %v266 = vlaneseq
      %v267 = vshrl.u32 %v266, 7
      %v268 = vsub.s32 3, %v267
      %v269 = vrot.slane %v233, %v268
      %v270 = vmul.f32 %v223, %v257
      %v271 = vmul.f32 %v225, %v261
      %v272 = vmul.f32 %v227, %v265
      %v273 = vmul.f32 %v229, %v269
      %v278 = vrot.slane %v270, 1
      %v279 = vrot.slane %v271, 1
      %v280 = vrot.slane %v272, 1
      %v281 = vrot.slane %v273, 1
      %v286 = vadd.f32 %v250, %v278
      %v287 = vadd.f32 %v251, %v279
      %v288 = vadd.f32 %v252, %v280
      %v289 = vadd.f32 %v253, %v281
      %v290 = vxor.u32 %v286, 2147483648
      %v291 = vxor.u32 %v287, 2147483648
      %v292 = vxor.u32 %v288, 2147483648
      %v293 = vxor.u32 %v289, 2147483648
      %v294 = vmul.f32 %v290, 1.442695
      %v295 = vpow.pop %v294
      %v296 = vmul.f32 %v291, 1.442695
      %v297 = vpow.pop %v296
      %v298 = vmul.f32 %v292, 1.442695
      %v299 = vpow.pop %v298
      %v300 = vmul.f32 %v293, 1.442695
      %v301 = vpow.pop %v300
      %v302 = vadd.f32 %v295, 1.0
      %v303 = vadd.f32 %v297, 1.0
      %v304 = vadd.f32 %v299, 1.0
      %v305 = vadd.f32 %v301, 1.0
      %v306 = vrcp.pop %v302
      %v307 = vmul.f32 1.0, %v306
      %v308 = vrcp.pop %v303
      %v309 = vmul.f32 1.0, %v308
      %v310 = vrcp.pop %v304
      %v311 = vmul.f32 1.0, %v310
      %v312 = vrcp.pop %v305
      %v313 = vmul.f32 1.0, %v312
      %v314 = vld [vmem:[%s1] sm:$0x70]
      %v315 = vld [vmem:[%s1 + $0x8] sm:$0x70]
      %v316 = vld [vmem:[%s1 + $0x10] sm:$0x70]
      %v317 = vld [vmem:[%s1 + $0x18] sm:$0x70]
      %v318 = vlaneseq
      %v319 = vshrl.u32 %v318, 7
      %v320 = vsub.s32 4, %v319
      %v321 = vrot.slane %v314, %v320
      %v322 = vlaneseq
      %v323 = vshrl.u32 %v322, 7
      %v324 = vsub.s32 4, %v323
      %v325 = vrot.slane %v315, %v324
      %v326 = vlaneseq
      %v327 = vshrl.u32 %v326, 7
      %v328 = vsub.s32 4, %v327
      %v329 = vrot.slane %v316, %v328
      %v330 = vlaneseq
      %v331 = vshrl.u32 %v330, 7
      %v332 = vsub.s32 4, %v331
      %v333 = vrot.slane %v317, %v332
      %v334 = vmul.f32 %v307, %v321
      %v335 = vmul.f32 %v309, %v325
      %v336 = vmul.f32 %v311, %v329
      %v337 = vmul.f32 %v313, %v333
      %v338 = vlaneseq
      %v339 = vshrl.u32 %v338, 7
      %v340 = vsub.s32 5, %v339
      %v341 = vrot.slane %v314, %v340
      %v342 = vlaneseq
      %v343 = vshrl.u32 %v342, 7
      %v344 = vsub.s32 5, %v343
      %v345 = vrot.slane %v315, %v344
      %v346 = vlaneseq
      %v347 = vshrl.u32 %v346, 7
      %v348 = vsub.s32 5, %v347
      %v349 = vrot.slane %v316, %v348
      %v350 = vlaneseq
      %v351 = vshrl.u32 %v350, 7
      %v352 = vsub.s32 5, %v351
      %v353 = vrot.slane %v317, %v352
      %v354 = vmul.f32 %v307, %v341
      %v355 = vmul.f32 %v309, %v345
      %v356 = vmul.f32 %v311, %v349
      %v357 = vmul.f32 %v313, %v353
      %v362 = vrot.slane %v354, 1
      %v363 = vrot.slane %v355, 1
      %v364 = vrot.slane %v356, 1
      %v365 = vrot.slane %v357, 1
      %v370 = vadd.f32 %v334, %v362
      %v371 = vadd.f32 %v335, %v363
      %v372 = vadd.f32 %v336, %v364
      %v373 = vadd.f32 %v337, %v365
      %v374 = vlaneseq
      %v375 = vshrl.u32 %v374, 7
      %v376 = vsub.s32 6, %v375
      %v377 = vrot.slane %v314, %v376
      %v378 = vlaneseq
      %v379 = vshrl.u32 %v378, 7
      %v380 = vsub.s32 6, %v379
      %v381 = vrot.slane %v315, %v380
      %v382 = vlaneseq
      %v383 = vshrl.u32 %v382, 7
      %v384 = vsub.s32 6, %v383
      %v385 = vrot.slane %v316, %v384
      %v386 = vlaneseq
      %v387 = vshrl.u32 %v386, 7
      %v388 = vsub.s32 6, %v387
      %v389 = vrot.slane %v317, %v388
      %v390 = vmul.f32 %v307, %v377
      %v391 = vmul.f32 %v309, %v381
      %v392 = vmul.f32 %v311, %v385
      %v393 = vmul.f32 %v313, %v389
      %v398 = vrot.slane %v390, 2
      %v399 = vrot.slane %v391, 2
      %v400 = vrot.slane %v392, 2
      %v401 = vrot.slane %v393, 2
      %v406 = vadd.f32 %v370, %v398
      %v407 = vadd.f32 %v371, %v399
      %v408 = vadd.f32 %v372, %v400
      %v409 = vadd.f32 %v373, %v401
      %v410 = vxor.u32 %v406, 2147483648
      %v411 = vxor.u32 %v407, 2147483648
      %v412 = vxor.u32 %v408, 2147483648
      %v413 = vxor.u32 %v409, 2147483648
      %v414 = vmul.f32 %v410, 1.442695
      %v415 = vpow.pop %v414
      %v416 = vmul.f32 %v411, 1.442695
      %v417 = vpow.pop %v416
      %v418 = vmul.f32 %v412, 1.442695
      %v419 = vpow.pop %v418
      %v420 = vmul.f32 %v413, 1.442695
      %v421 = vpow.pop %v420
      %v422 = vadd.f32 %v415, 1.0
      %v423 = vadd.f32 %v417, 1.0
      %v424 = vadd.f32 %v419, 1.0
      %v425 = vadd.f32 %v421, 1.0
      %v426 = vrcp.pop %v422
      %v427 = vmul.f32 1.0, %v426
      %v428 = vrcp.pop %v423
      %v429 = vmul.f32 1.0, %v428
      %v430 = vrcp.pop %v424
      %v431 = vmul.f32 1.0, %v430
      %v432 = vrcp.pop %v425
      %v433 = vmul.f32 1.0, %v432
      %v434 = vld [vmem:[%s1] sm:$0x80]
      %v435 = vld [vmem:[%s1 + $0x8] sm:$0x80]
      %v436 = vld [vmem:[%s1 + $0x10] sm:$0x80]
      %v437 = vld [vmem:[%s1 + $0x18] sm:$0x80]
      %v438 = vld [vmem:[%s1 + $0x20] sm:$0x3]
      %v439 = vld [vmem:[%s1 + $0x28] sm:$0x3]
      %v440 = vld [vmem:[%s1 + $0x30] sm:$0x3]
      %v441 = vld [vmem:[%s1 + $0x38] sm:$0x3]
      %v446 = vrot.slane %v434, 7
      %v447 = vrot.slane %v435, 7
      %v448 = vrot.slane %v436, 7
      %v449 = vrot.slane %v437, 7
      %v454 = vmul.f32 %v427, %v446
      %v455 = vmul.f32 %v429, %v447
      %v456 = vmul.f32 %v431, %v448
      %v457 = vmul.f32 %v433, %v449
      %v462 = vrot.slane %v438, 7
      %v463 = vrot.slane %v439, 7
      %v464 = vrot.slane %v440, 7
      %v465 = vrot.slane %v441, 7
      %v470 = vmul.f32 %v427, %v462
      %v471 = vmul.f32 %v429, %v463
      %v472 = vmul.f32 %v431, %v464
      %v473 = vmul.f32 %v433, %v465
      %v478 = vrot.slane %v470, 1
      %v479 = vrot.slane %v471, 1
      %v480 = vrot.slane %v472, 1
      %v481 = vrot.slane %v473, 1
      %v486 = vadd.f32 %v454, %v478
      %v487 = vadd.f32 %v455, %v479
      %v488 = vadd.f32 %v456, %v480
      %v489 = vadd.f32 %v457, %v481
      %v490 = vrot.slane %v470, 2
      %v491 = vrot.slane %v471, 2
      %v492 = vrot.slane %v472, 2
      %v493 = vrot.slane %v473, 2
      %v498 = vadd.f32 %v486, %v490
      %v499 = vadd.f32 %v487, %v491
      %v500 = vadd.f32 %v488, %v492
      %v501 = vadd.f32 %v489, %v493
      %v502 = vxor.u32 %v498, 2147483648
      %v503 = vxor.u32 %v499, 2147483648
      %v504 = vxor.u32 %v500, 2147483648
      %v505 = vxor.u32 %v501, 2147483648
      %v506 = vmul.f32 %v502, 1.442695
      %v507 = vpow.pop %v506
      %v508 = vmul.f32 %v503, 1.442695
      %v509 = vpow.pop %v508
      %v510 = vmul.f32 %v504, 1.442695
      %v511 = vpow.pop %v510
      %v512 = vmul.f32 %v505, 1.442695
      %v513 = vpow.pop %v512
      %v514 = vadd.f32 %v507, 1.0
      %v515 = vadd.f32 %v509, 1.0
      %v516 = vadd.f32 %v511, 1.0
      %v517 = vadd.f32 %v513, 1.0
      %v518 = vrcp.pop %v514
      %v519 = vmul.f32 1.0, %v518
      %v520 = vrcp.pop %v515
      %v521 = vmul.f32 1.0, %v520
      %v522 = vrcp.pop %v516
      %v523 = vmul.f32 1.0, %v522
      %v524 = vrcp.pop %v517
      %v525 = vmul.f32 1.0, %v524
      %v530 = vcombine.low %v519, %v521
      %v531 = vcombine.low %v523, %v525
      %v533 = vunpack.c.l.s4 1966171168
      %v534 = vunpack.c.0.s8 %v533
      %v535 = vlaneseq
      %v536 = vshrl.u32 %v535, 7
      %v537 = vsub.s32 %v534, %v536
      %v538 = vrot.slane %v530, %v537
      %v540 = vunpack.c.l.s4 1966171168
      %v541 = vunpack.c.0.s8 %v540
      %v542 = vlaneseq
      %v543 = vshrl.u32 %v542, 7
      %v544 = vsub.s32 %v541, %v543
      %v545 = vrot.slane %v531, %v544
      %v546 = vcombine.low %v538, %v545
      %v548 = vunpack.c.l.s4 1966171168
      %v549 = vunpack.c.0.s8 %v548
      %v550 = vlaneseq
      %v551 = vshrl.u32 %v550, 7
      %v552 = vsub.s32 %v549, %v551
      %v553 = vrot.slane %v546, %v552
      %v555 = vlaneseq
      %vm556 = vcmp.ge.s32.totalorder %v555, 0
      %vm557 = vcmp.lt.s32.totalorder %v555, 512
      %vm558 = vmand %vm556, %vm557
      %559 = vst.msk [vmem:[%s141] sm:$0xf] %vm558, %v553
      %p560 = scmp.lt.s32.totalorder %s13, 3
      %s561 = scalar_select %p560, %s13, 3
      %s562 = smul.addr %s561, 4
      %s563 = scalar_lea.vmem %s2, %s562
      // Predicated region
      $region29: #{csm_forward.1} parent=27 // pred_check
        %p564 = pneg %p78
      $region30: #{csm_forward.1} parent=27 // pred_check_branch
        %566 = sbr.rel (%p564) target = $region32
      $region31: #{csm_forward.1} parent=27 // pred_region
        _
      $region32: #{csm_forward.1} parent=27 // pred_fallthru
        _
    $region28: #{csm_forward.1} parent=5 // pred_fallthru
      _
    %p567 = scmp.le.s32.totalorder 2, %s8
    // Predicated region
    $region33: #{csm_forward.1} parent=5 // pred_check
      %p568 = pneg %p567
    $region34: #{csm_forward.1} parent=5 // pred_check_branch
      %570 = sbr.rel (%p568) target = $region36
    $region35: #{csm_forward.1} parent=5 // pred_region
      %s571 = ssub.s32 %s8, 2
      // Predicated region
      $region37: #{csm_forward.1} parent=35 // pred_check
        %p572 = pneg %p84
      $region38: #{csm_forward.1} parent=35 // pred_check_branch
        %574 = sbr.rel (%p572) target = $region40
      $region39: #{csm_forward.1} parent=35 // pred_region
        %p575 = scmp.lt.s32.totalorder %s14, 3
        %s576 = scalar_select %p575, %s14, 3
        %s577 = smul.addr %s576, 4
        %s578 = scalar_lea.vmem %s2, %s577
      $region40: #{csm_forward.1} parent=35 // pred_fallthru
        _
    $region36: #{csm_forward.1} parent=5 // pred_fallthru
      _
  $region6: #{csm_forward.1} parent=0 // loop_footer
    %s12 = sadd.s32 1, %s8
  $region7: #{csm_forward.1} parent=0 // loop_footer_branch
    %7 = sbr.rel target = $region3
  $region8: #{csm_forward.1} parent=0 // loop_exit
    _

</llo_original>
